<compile_context>
chip_gen: v7x
topology: tpu7x:2x2x1
jax: 0.10.0
libtpu: 0.0.40
codegen_flags: <defaults>
</compile_context>

<pallas_src>
import functools

import jax
import jax.numpy as jnp
import numpy as np
from jax.experimental import pallas as pl
from jax.experimental.pallas import tpu as pltpu


def _num_tensorcores():
    """TensorCores per jax device: 2 on v7x-class chips, 1 on v5e/v6e (conservative)."""
    try:
        kind = jax.devices()[0].device_kind.lower()
    except Exception:
        return 1
    if "lite" in kind:                 # v5e / v6e report as "... lite"
        return 1
    for tag in ("v7", "7x"):           # dual-TensorCore chips targeted by the review
        if tag in kind:
            return 2
    return 1


def _particle_type_stats_kernel(logits_ref, labels_ref, loss_ref, cnt_ref, *, n_total):
    p = pl.program_id(0)               # TensorCore slot (size 1 on single-TC chips)
    i = pl.program_id(1)               # sample-tile index within the slot
    n_inner = pl.num_programs(1)

    # Output blocks are resident per-lane accumulators across the inner axis.
    @pl.when(i == 0)
    def _():
        loss_ref[...] = jnp.zeros_like(loss_ref)
        cnt_ref[...] = jnp.zeros_like(cnt_ref)

    x = logits_ref[...].astype(jnp.float32)          # (C, TN): classes on sublanes
    lab = labels_ref[...]                            # (1, TN) int32
    c, tn = x.shape

    # Mask lanes past the true N (ragged tail / clamped duplicate tile).  Every
    # quantity derived from the garbage lanes must stay behind these selects.
    lane = jax.lax.broadcasted_iota(jnp.int32, (1, tn), 1)
    start = (p * n_inner + i) * tn
    inb = (start + lane) < n_total
    lab = jnp.where(inb, lab, -1)                    # out-of-range samples -> ignored

    cls_iota = jax.lax.broadcasted_iota(jnp.int32, (c, tn), 0)
    onehot_b = cls_iota == lab                       # all-False column when lab == -1

    # ----- cross entropy with ignore_index = -1 (per-sample NLL) -----
    m = jnp.max(x, axis=0, keepdims=True)                               # (1, TN)
    lse = m + jnp.log(jnp.sum(jnp.exp(x - m), axis=0, keepdims=True))   # (1, TN)
    picked = jnp.sum(x * onehot_b.astype(jnp.float32), axis=0, keepdims=True)
    valid = lab != -1
    loss_i = jnp.where(valid, lse - picked, 0.0)

    # ----- argmax prediction: first occurrence on ties (matches torch.argmax).
    # The cheaper `picked == m` form changes tie-breaking, so it is NOT used.
    is_max = x >= m
    pred = jnp.min(jnp.where(is_max, cls_iota, c), axis=0, keepdims=True)
    correct = pred == lab                            # lab == -1 never matches

    # ----- lane-shaped accumulation only; final reductions happen once in XLA -----
    loss_ref[...] += loss_i[None]
    packed = onehot_b.astype(jnp.int32) | ((onehot_b & correct).astype(jnp.int32) << 16)
    cnt_ref[...] += packed[None]


@functools.partial(jax.jit, static_argnames=("tile_n", "num_slots"))
def particle_type_loss_stats(logits, labels, tile_n=32768, num_slots=None):
    """Cross-entropy / accuracy statistics for ParticleTypeLoss.

    logits: (N, C) float -- the class-major relayout is done inside this jit so XLA
                            can fuse it into the pallas_call (allow_input_fusion);
                            producers that can emit (C, N) should do so upstream.
    labels: (N,)   int   -- class ids, -1 == ignore_index.
    Returns (loss_sum f32 scalar, class_total int32 (C,), class_correct int32 (C,)).
    """
    n, c = logits.shape

    # Lane-dense layout: samples on the 128-wide lane axis, classes on sublanes.
    logits_cn = logits.T                                 # (C, N)
    labels2d = labels.reshape(1, n).astype(jnp.int32)    # (1, N)

    slots = int(num_slots) if num_slots is not None else _num_tensorcores()
    slots = max(1, min(2, slots))

    # Static tile sizing: multiple of 128 lanes, clamped to the padded input and a
    # VMEM-friendly ceiling; floor keeps the packed 16-bit per-lane counters exact.
    n_pad = ((n + 127) // 128) * 128
    tile = max(int(tile_n), -(-n // 65535))
    tile = ((tile + 127) // 128) * 128
    tile = max(128, min(tile, n_pad, 131072))

    tiles_total = -(-n // tile)
    inner = -(-tiles_total // slots)
    assert inner < (1 << 16), "raise tile_n: packed 16-bit per-lane counters would overflow"

    def tile_idx(p, i):
        # Clamp so a trailing duplicate tile never indexes past the array; the
        # in-kernel mask uses the *unclamped* position and zeroes it out.
        return (0, jnp.minimum(p * inner + i, tiles_total - 1))

    out_shapes = (
        jax.ShapeDtypeStruct((slots, 1, tile), jnp.float32),   # per-lane loss partials
        jax.ShapeDtypeStruct((slots, c, tile), jnp.int32),     # packed count | correct<<16
    )
    out_specs = (
        pl.BlockSpec((1, 1, tile), lambda p, i: (p, 0, 0)),
        pl.BlockSpec((1, c, tile), lambda p, i: (p, 0, 0)),
    )

    if slots > 1:
        dims = (pltpu.CORE_PARALLEL, pltpu.ARBITRARY)   # real 2-TensorCore split (v7x)
    else:
        dims = ("arbitrary", "arbitrary")               # no wasted outer axis on 1-TC chips

    # Scoped-VMEM budget from the actual buffers: logits/labels blocks double-buffered
    # plus the two resident output accumulators, all padded to 8 sublanes.
    vmem_need = 8 * (8 * tile * 4)
    vmem_limit = int(min(max(int(2.5 * vmem_need), 24 << 20), 56 << 20))

    kernel = functools.partial(_particle_type_stats_kernel, n_total=n)

    loss_acc, cnt_acc = pl.pallas_call(
        kernel,
        out_shape=out_shapes,
        grid_spec=pltpu.PrefetchScalarGridSpec(
            num_scalar_prefetch=0,
            grid=(slots, inner),
            in_specs=[
                pl.BlockSpec((c, tile), tile_idx),
                pl.BlockSpec((1, tile), tile_idx),
            ],
            out_specs=out_specs,
        ),
        compiler_params=pltpu.CompilerParams(
            dimension_semantics=dims,
            vmem_limit_bytes=vmem_limit,
            allow_input_fusion=[True, True]),
        cost_estimate=pl.CostEstimate(
            flops=12 * n * c,
            transcendentals=n * c,
            bytes_accessed=4 * n * (c + 1)),
    )(logits_cn, labels2d)

    # Tiny on-device reductions (exact int32 counts) -> one small host transfer later.
    loss_sum = jnp.sum(loss_acc)
    ctot = jnp.sum(cnt_acc & 0xFFFF, axis=(0, 2))
    ccorr = jnp.sum((cnt_acc >> 16) & 0xFFFF, axis=(0, 2))
    return loss_sum, ctot, ccorr


def particle_type_loss(out, type_labels):
    """JAX/Pallas port of ParticleTypeLoss.forward.

    out:         {'logits': [logits]} with logits shape (N, C) float
    type_labels: [labels] with labels shape (N, K); column 0 holds the class id
                 (int, -1 == ignore_index).
    """
    logits = out['logits'][0]
    labels = type_labels[0][:, 0].astype(jnp.int32)
    n, c = logits.shape

    loss_sum, ctot, ccorr = jax.device_get(particle_type_loss_stats(logits, labels))
    ctot = np.asarray(ctot)
    ccorr = np.asarray(ccorr)
    valid_cnt = int(ctot.sum())
    corr_cnt = int(ccorr.sum())

    # CrossEntropyLoss(ignore_index=-1) mean-reduces over non-ignored samples.
    loss = float(loss_sum) / valid_cnt if valid_cnt > 0 else float('nan')
    accuracy = corr_cnt / float(n)     # reference divides by total N (incl. ignored)

    res = {'loss': loss, 'accuracy': accuracy}
    # Per-class accuracies for classes present in labels (labels.unique()).
    if valid_cnt < n:                  # some labels were -1
        res['accuracy_-1'] = 0.0       # prediction is never -1
    for cid in range(c):
        if ctot[cid] > 0:
            res['accuracy_{}'.format(cid)] = float(ccorr[cid]) / float(ctot[cid])
    return res


if __name__ == "__main__":
    key = jax.random.PRNGKey(0)
    k1, k2 = jax.random.split(key)

    N, C = 300, 5  # 5 particle types; N deliberately NOT a multiple of 128 (tail test)
    logits = jax.random.normal(k1, (N, C), dtype=jnp.float32)
    # labels in [-1, C): -1 is the ignore index; extra dummy column like the real batch.
    cls_ids = jax.random.randint(k2, (N, 1), -1, C, dtype=jnp.int32)
    type_labels_arr = jnp.concatenate([cls_ids, jnp.zeros((N, 1), jnp.int32)], axis=1)

    # Run kernel once and block on the device result.
    stats_dev = particle_type_loss_stats(logits, type_labels_arr[:, 0])
    jax.block_until_ready(stats_dev)

    res = particle_type_loss({'logits': [logits]}, [type_labels_arr])

    # Small-tile variant: multiple grid steps + ragged tail must give the same stats.
    loss_s, ctot_s, ccorr_s = jax.device_get(
        particle_type_loss_stats(logits, type_labels_arr[:, 0], tile_n=128))
    loss_d, ctot_d, ccorr_d = jax.device_get(stats_dev)

    # ----- numpy reference -----
    lg = np.asarray(logits, dtype=np.float64)
    lb = np.asarray(cls_ids[:, 0])
    valid = lb != -1
    m = lg.max(axis=1, keepdims=True)
    lse = (m + np.log(np.exp(lg - m).sum(axis=1, keepdims=True)))[:, 0]
    picked = lg[np.arange(N), np.clip(lb, 0, C - 1)]
    ref_loss = float(np.where(valid, lse - picked, 0.0).sum() / valid.sum())
    pred = lg.argmax(axis=1)
    ref_acc = float((pred == lb).sum()) / float(N)

    assert abs(res['loss'] - ref_loss) < 5e-4, (res['loss'], ref_loss)
    assert abs(res['accuracy'] - ref_acc) < 1e-6, (res['accuracy'], ref_acc)
    for c_id in np.unique(lb):
        mask = lb == c_id
        ref_c = float((pred[mask] == lb[mask]).sum()) / float(mask.sum())
        key_name = 'accuracy_{}'.format(int(c_id))
        assert key_name in res, key_name
        assert abs(res[key_name] - ref_c) < 1e-6, (key_name, res[key_name], ref_c)

    # Tiling must not change the statistics (counts are exact integers).
    assert np.array_equal(np.asarray(ctot_s), np.asarray(ctot_d)), (ctot_s, ctot_d)
    assert np.array_equal(np.asarray(ccorr_s), np.asarray(ccorr_d)), (ccorr_s, ccorr_d)
    assert abs(float(loss_s) - float(loss_d)) < 1e-3 * max(1.0, abs(float(loss_d)))

    print("KERNEL_OK")
</pallas_src>

<mosaic_0001>
module attributes {stable_mosaic.version = 11 : i64} {
  func.func @_particle_type_stats_kernel(%arg0: i32, %arg1: i32, %arg2: memref<5x384xf32, #tpu.memory_space<vmem>>, %arg3: memref<1x384xi32, #tpu.memory_space<vmem>>, %arg4: memref<1x1x384xf32, #tpu.memory_space<vmem>>, %arg5: memref<1x5x384xi32, #tpu.memory_space<vmem>>) attributes {dimension_semantics = [#tpu.dimension_semantics<arbitrary>, #tpu.dimension_semantics<arbitrary>], iteration_bounds = array<i64: 1, 1>, scalar_prefetch = 0 : i64, scratch_operands = 0 : i64, tpu.core_type = #tpu.core_type<tc>, window_params = [{transform_indices = @transform_0, window_bounds = array<i64: 5, 384>}, {transform_indices = @transform_1, window_bounds = array<i64: 1, 384>}, {transform_indices = @transform_2, window_bounds = array<i64: 1, 1, 384>}, {transform_indices = @transform_3, window_bounds = array<i64: 1, 5, 384>}]} {
    %c0_i32 = arith.constant 0 : i32
    %0 = arith.cmpi eq, %arg1, %c0_i32 : i32
    %1 = arith.extui %0 : i1 to i32
    %c0_i32_0 = arith.constant 0 : i32
    %2 = arith.cmpi ne, %1, %c0_i32_0 : i32
    scf.if %2 {
      %cst_21 = arith.constant 0.000000e+00 : f32
      %59 = vector.broadcast %cst_21 : f32 to vector<1x1x384xf32>
      %c0_22 = arith.constant 0 : index
      %c0_23 = arith.constant 0 : index
      %c0_24 = arith.constant 0 : index
      %60 = vector.load %arg4[%c0_22, %c0_23, %c0_24] : memref<1x1x384xf32, #tpu.memory_space<vmem>>, vector<1x1x384xf32>
      tpu.vector_store %arg4[%c0_22, %c0_23, %c0_24], %59 {strides = array<i32>} : memref<1x1x384xf32, #tpu.memory_space<vmem>>, vector<1x1x384xf32>,
      %c0_i32_25 = arith.constant 0 : i32
      %61 = vector.broadcast %c0_i32_25 : i32 to vector<1x5x384xi32>
      %c0_26 = arith.constant 0 : index
      %c0_27 = arith.constant 0 : index
      %c0_28 = arith.constant 0 : index
      %62 = vector.load %arg5[%c0_26, %c0_27, %c0_28] : memref<1x5x384xi32, #tpu.memory_space<vmem>>, vector<1x5x384xi32>
      tpu.vector_store %arg5[%c0_26, %c0_27, %c0_28], %61 {strides = array<i32>} : memref<1x5x384xi32, #tpu.memory_space<vmem>>, vector<1x5x384xi32>,
    } else {
    }
    %c0 = arith.constant 0 : index
    %c0_1 = arith.constant 0 : index
    %3 = vector.load %arg2[%c0, %c0_1] : memref<5x384xf32, #tpu.memory_space<vmem>>, vector<5x384xf32>
    %c0_2 = arith.constant 0 : index
    %c0_3 = arith.constant 0 : index
    %4 = vector.load %arg3[%c0_2, %c0_3] : memref<1x384xi32, #tpu.memory_space<vmem>>, vector<1x384xi32>
    %5 = tpu.iota {dimensions = array<i32: 1>} : vector<1x384xi32>
    %c1_i32 = arith.constant 1 : i32
    %6 = arith.muli %arg0, %c1_i32 : i32
    %7 = arith.addi %6, %arg1 : i32
    %c384_i32 = arith.constant 384 : i32
    %8 = arith.muli %7, %c384_i32 : i32
    %9 = vector.broadcast %8 : i32 to vector<1x384xi32>
    %10 = arith.addi %9, %5 : vector<1x384xi32>
    %c300_i32 = arith.constant 300 : i32
    %11 = vector.broadcast %c300_i32 : i32 to vector<1x384xi32>
    %12 = arith.cmpi slt, %10, %11 : vector<1x384xi32>
    %c-1_i32 = arith.constant -1 : i32
    %13 = vector.broadcast %c-1_i32 : i32 to vector<1x384xi32>
    %14 = arith.select %12, %4, %13 : vector<1x384xi1>, vector<1x384xi32>
    %15 = tpu.iota {dimensions = array<i32: 0>} : vector<5x384xi32>
    %16 = vector.broadcast %14 : vector<1x384xi32> to vector<5x384xi32>
    %17 = arith.cmpi eq, %15, %16 : vector<5x384xi32>
    %cst = arith.constant dense<0xFF800000> : vector<384xf32>
    %18 = vector.multi_reduction <maximumf>, %3, %cst [0] : vector<5x384xf32> to vector<384xf32>
    %19 = vector.shape_cast %18 : vector<384xf32> to vector<1x384xf32>
    %20 = vector.broadcast %19 : vector<1x384xf32> to vector<5x384xf32>
    %21 = arith.subf %3, %20 : vector<5x384xf32>
    %22 = math.exp %21 : vector<5x384xf32>
    %cst_4 = arith.constant dense<0.000000e+00> : vector<384xf32>
    %23 = vector.multi_reduction <add>, %22, %cst_4 [0] : vector<5x384xf32> to vector<384xf32>
    %24 = vector.shape_cast %23 : vector<384xf32> to vector<1x384xf32>
    %25 = math.log %24 : vector<1x384xf32>
    %26 = arith.addf %19, %25 : vector<1x384xf32>
    %27 = arith.extui %17 : vector<5x384xi1> to vector<5x384xi32>
    %28 = arith.sitofp %27 : vector<5x384xi32> to vector<5x384xf32>
    %29 = arith.mulf %3, %28 : vector<5x384xf32>
    %cst_5 = arith.constant dense<0.000000e+00> : vector<384xf32>
    %30 = vector.multi_reduction <add>, %29, %cst_5 [0] : vector<5x384xf32> to vector<384xf32>
    %31 = vector.shape_cast %30 : vector<384xf32> to vector<1x384xf32>
    %c-1_i32_6 = arith.constant -1 : i32
    %32 = vector.broadcast %c-1_i32_6 : i32 to vector<1x384xi32>
    %33 = arith.cmpi ne, %14, %32 : vector<1x384xi32>
    %34 = arith.subf %26, %31 : vector<1x384xf32>
    %cst_7 = arith.constant 0.000000e+00 : f32
    %35 = vector.broadcast %cst_7 : f32 to vector<1x384xf32>
    %36 = arith.select %33, %34, %35 : vector<1x384xi1>, vector<1x384xf32>
    %37 = vector.broadcast %19 : vector<1x384xf32> to vector<5x384xf32>
    %38 = arith.cmpf oge, %3, %37 : vector<5x384xf32>
    %c5_i32 = arith.constant 5 : i32
    %39 = vector.broadcast %c5_i32 : i32 to vector<5x384xi32>
    %40 = arith.select %38, %15, %39 : vector<5x384xi1>, vector<5x384xi32>
    %cst_8 = arith.constant dense<2147483647> : vector<384xi32>
    %41 = vector.multi_reduction <minsi>, %40, %cst_8 [0] : vector<5x384xi32> to vector<384xi32>
    %42 = vector.shape_cast %41 : vector<384xi32> to vector<1x384xi32>
    %43 = arith.cmpi eq, %42, %14 : vector<1x384xi32>
    %c0_9 = arith.constant 0 : index
    %c0_10 = arith.constant 0 : index
    %c0_11 = arith.constant 0 : index
    %44 = vector.load %arg4[%c0_9, %c0_10, %c0_11] : memref<1x1x384xf32, #tpu.memory_space<vmem>>, vector<1x1x384xf32>
    %45 = vector.shape_cast %36 : vector<1x384xf32> to vector<1x1x384xf32>
    %46 = arith.addf %44, %45 : vector<1x1x384xf32>
    %c0_12 = arith.constant 0 : index
    %c0_13 = arith.constant 0 : index
    %c0_14 = arith.constant 0 : index
    %47 = vector.load %arg4[%c0_12, %c0_13, %c0_14] : memref<1x1x384xf32, #tpu.memory_space<vmem>>, vector<1x1x384xf32>
    tpu.vector_store %arg4[%c0_12, %c0_13, %c0_14], %46 {strides = array<i32>} : memref<1x1x384xf32, #tpu.memory_space<vmem>>, vector<1x1x384xf32>,
    %48 = arith.extui %17 : vector<5x384xi1> to vector<5x384xi32>
    %49 = vector.broadcast %43 : vector<1x384xi1> to vector<5x384xi1>
    %50 = arith.andi %17, %49 : vector<5x384xi1>
    %51 = arith.extui %50 : vector<5x384xi1> to vector<5x384xi32>
    %c16_i32 = arith.constant 16 : i32
    %52 = vector.broadcast %c16_i32 : i32 to vector<5x384xi32>
    %53 = arith.shli %51, %52 : vector<5x384xi32>
    %54 = arith.ori %48, %53 : vector<5x384xi32>
    %c0_15 = arith.constant 0 : index
    %c0_16 = arith.constant 0 : index
    %c0_17 = arith.constant 0 : index
    %55 = vector.load %arg5[%c0_15, %c0_16, %c0_17] : memref<1x5x384xi32, #tpu.memory_space<vmem>>, vector<1x5x384xi32>
    %56 = vector.shape_cast %54 : vector<5x384xi32> to vector<1x5x384xi32>
    %57 = arith.addi %55, %56 : vector<1x5x384xi32>
    %c0_18 = arith.constant 0 : index
    %c0_19 = arith.constant 0 : index
    %c0_20 = arith.constant 0 : index
    %58 = vector.load %arg5[%c0_18, %c0_19, %c0_20] : memref<1x5x384xi32, #tpu.memory_space<vmem>>, vector<1x5x384xi32>
    tpu.vector_store %arg5[%c0_18, %c0_19, %c0_20], %57 {strides = array<i32>} : memref<1x5x384xi32, #tpu.memory_space<vmem>>, vector<1x5x384xi32>,
    return
  }
  func.func @transform_0(%arg0: i32, %arg1: i32) -> (i32, i32) {
    %c1_i32 = arith.constant 1 : i32
    %0 = arith.muli %arg0, %c1_i32 : i32
    %1 = arith.addi %0, %arg1 : i32
    %c0_i32 = arith.constant 0 : i32
    %2 = arith.minsi %1, %c0_i32 : i32
    %c0_i32_0 = arith.constant 0 : i32
    %c0_i32_1 = arith.constant 0 : i32
    return %c0_i32_0, %2 : i32, i32
  }
  func.func @transform_1(%arg0: i32, %arg1: i32) -> (i32, i32) {
    %c1_i32 = arith.constant 1 : i32
    %0 = arith.muli %arg0, %c1_i32 : i32
    %1 = arith.addi %0, %arg1 : i32
    %c0_i32 = arith.constant 0 : i32
    %2 = arith.minsi %1, %c0_i32 : i32
    %c0_i32_0 = arith.constant 0 : i32
    %c0_i32_1 = arith.constant 0 : i32
    return %c0_i32_0, %2 : i32, i32
  }
  func.func @transform_2(%arg0: i32, %arg1: i32) -> (i32, i32, i32) {
    %c0_i32 = arith.constant 0 : i32
    %c0_i32_0 = arith.constant 0 : i32
    %c0_i32_1 = arith.constant 0 : i32
    return %arg0, %c0_i32, %c0_i32_0 : i32, i32, i32
  }
  func.func @transform_3(%arg0: i32, %arg1: i32) -> (i32, i32, i32) {
    %c0_i32 = arith.constant 0 : i32
    %c0_i32_0 = arith.constant 0 : i32
    %c0_i32_1 = arith.constant 0 : i32
    return %arg0, %c0_i32, %c0_i32_0 : i32, i32, i32
  }
}

</mosaic_0001>

<llo_original>
// kernel: particle_type_loss_stats.2
$region0: #{particle_type_loss_stats.2}
  #allocation0 [shape = 'u32[]', space=smem, size = 0x4, offset = 0x4, fixed_abs, tag = 'smem constant byte address 0x4 - core index']
  #allocation1 [shape = 'u32[144,128]{1,0:T(1,128)}', space=vmem, size = 0x12000, scoped, tag = 'internal scratch']
  %s0 = inlined_call_operand.vmem [shape: f32[300,5], index: 0, kind: input, shape index: {}]
  %s1 = inlined_call_operand.hbm [shape: s32[300], index: 1, kind: input, shape index: {}]
  %s2 = inlined_call_operand.vmem [shape: f32[1,1,384], index: 2, kind: output, shape index: {0}]
  %s3 = inlined_call_operand.vmem [shape: s32[1,5,384], index: 3, kind: output, shape index: {1}]
  %4 = xla_tuple %s2, %s3
  %s5 = sld [smem:[#allocation0]]
  $region34: #{particle_type_loss_stats.2} parent=0
    _
  %s7 = ssub.s32 1, %s5
  %s8 = scalar_select 0, %s7, %s5
  $region1: #{particle_type_loss_stats.2} parent=0
    #allocation2 [shape = 'u8[4096]{0}', space=vmem, size = 0x1000, scoped, tag = 'operand span for operand 1']
    #allocation3 [shape = 's32[1]{0}', space=sflag, size = 0x4, scoped, tag = 'scoped memory for particle_type_loss_stats.2']
    #allocation4 [shape = 'u8[12288]{0}', space=vmem, size = 0x3000, dematerialized = true, scoped, tag = 'FusionAdapter Buffer %fusion.1 = f32[5,300]{1,0:T(8,128)} fusion(%param_0.7), kind=kLoop, calls=%fused_computation.1.clone, metadata={op_name="jit(particle_type_loss_stats)/transpose" stack_frame_id=11}']
    #allocation5 [shape = 'u8[1536]{0}', space=vmem, size = 0x800, dematerialized = true, scoped, tag = 'FusionAdapter Buffer %fusion.2 = s32[1,300]{1,0:T(1,128)} fusion(%param_1.8), kind=kLoop, calls=%fused_computation.4.clone, metadata={op_name="jit(particle_type_loss_stats)/reshape" stack_frame_id=12}']
    %9 = vsyncpa [#allocation3], 0
    // Predicated region
    $region2: #{particle_type_loss_stats.2} parent=1 // pred_check
      _
    $region3: #{particle_type_loss_stats.2} parent=1 // pred_check_branch
      %11 = sbr.rel (0) target = $region5
    $region4: #{particle_type_loss_stats.2} parent=1 // pred_region
      %s12 = sadd.s32 0, 0
      %p13 = scmp.lt.s32.totalorder %s12, 0
      %s14 = scalar_select %p13, %s12, 0
      %s15 = smul.u32 3, %s14
      %p16 = scmp.lt.s32.totalorder %s15, 2
      %s17 = scalar_select %p16, %s15, 2
      %s18 = smul.addr %s17, 8
      %s19 = scalar_lea.vmem %s0, %s18
      %s20 = sadd.s32 0, 0
      %p21 = scmp.lt.s32.totalorder %s20, 0
      %s22 = scalar_select %p21, %s20, 0
      %s23 = smul.u32 3, %s22
    $region5: #{particle_type_loss_stats.2} parent=1 // pred_fallthru
      _
    // Predicated region
    $region6: #{particle_type_loss_stats.2} parent=1 // pred_check
      _
    $region7: #{particle_type_loss_stats.2} parent=1 // pred_check_branch
      %25 = sbr.rel (0) target = $region9
    $region8: #{particle_type_loss_stats.2} parent=1 // pred_region
      %s26 = sadd.s32 0, 0
      %p27 = scmp.lt.s32.totalorder %s26, 0
      %s28 = scalar_select %p27, %s26, 0
      %s29 = smul.addr %s28, 384
      %s30 = sshrl.u32 %s29, 9
      %s31 = ssub.s32 1, %s30
      %s32 = smul.u32 64, %s31
      %s34 = ssub.s32 128, %s32
      %35 = vsyncadd [#allocation3], %s34
      %p36 = scmp.ne.s32.totalorder 0, %s32
      %s37 = smul.addr %s30, 64
      %s38 = scalar_lea.hbm %s1, %s37
      %s39 = smul.u32 %s31, 4
      %s40 = sshll.u32 %s39, 4
      %s41 = sshll.u32 [#allocation2], 4
      %s42 = int_to_ptr.vmem [resolvable:$true] %s41
      %44 = dma.hbm_to_vmem [thread:$0]  (%p36), %s38, %s40, %s42, [#allocation3]
    $region9: #{particle_type_loss_stats.2} parent=1 // pred_fallthru
      _
    // Predicated region
    $region10: #{particle_type_loss_stats.2} parent=1 // pred_check
      _
    $region11: #{particle_type_loss_stats.2} parent=1 // pred_check_branch
      %46 = sbr.rel (0) target = $region13
    $region12: #{particle_type_loss_stats.2} parent=1 // pred_region
      %47 = dma.done [#allocation3], 128
    $region13: #{particle_type_loss_stats.2} parent=1 // pred_fallthru
      _
    %s48 = sadd.s32 0, 0
    %p49 = scmp.lt.s32.totalorder %s48, 0
    %s50 = scalar_select %p49, %s48, 0
    %s51 = smul.u32 3, %s50
    %p52 = scmp.lt.s32.totalorder %s51, 2
    %s53 = scalar_select %p52, %s51, 2
    %s54 = smul.addr %s53, 8
    %s55 = scalar_lea.vmem %s0, %s54
    %s56 = sadd.s32 0, 0
    %p57 = scmp.lt.s32.totalorder %s56, 0
    %s58 = scalar_select %p57, %s56, 0
    %s59 = smul.u32 3, %s58
    %p60 = scmp.lt.s32.totalorder %s59, 2
    %s61 = scalar_select %p60, %s59, 2
    %s62 = smul.addr %s61, 8
    %s63 = scalar_lea.vmem %s0, %s62
    %s64 = sadd.s32 0, 0
    %p65 = scmp.lt.s32.totalorder %s64, 0
    %s66 = scalar_select %p65, %s64, 0
    %s67 = smul.u32 3, %s66
    %s68 = sadd.s32 0, 0
    %p69 = scmp.lt.s32.totalorder %s68, 0
    %s70 = scalar_select %p69, %s68, 0
    %s71 = smul.addr %s70, 384
    %s72 = sshrl.u32 %s71, 9
    %s73 = ssub.s32 1, %s72
    %s74 = smul.u32 64, %s73
    %v75 = vld [vmem:[%s63] sm:$0x1f]
    %77 = vst [vmem:[#allocation4] sm:$0xff] %v75
    %s78 = scalar_lea.vmem %s63, 8
    %v79 = vld [vmem:[%s78] sm:$0x1f]
    %s80 = scalar_lea.vmem [#allocation4], 8
    %82 = vst [vmem:[%s80] sm:$0xff] %v79
    %s83 = scalar_lea.vmem %s63, 16
    %v84 = vld [vmem:[%s83] sm:$0x1f]
    %s85 = scalar_lea.vmem [#allocation4], 16
    %87 = vst [vmem:[%s85] sm:$0xff] %v84
    %s88 = sadd.s32 0, 0
    %p89 = scmp.lt.s32.totalorder %s88, 0
    %s90 = scalar_select %p89, %s88, 0
    %s91 = smul.addr %s90, 3
    %s92 = smul.addr %s91, 128
    %s93 = smul.addr %s72, 512
    %s94 = ssub.s32 %s92, %s93
    %s95 = sshrl.u32 %s94, 9
    %s96 = sand.u32 %s94, 511
    %s97 = sshrl.u32 %s96, 7
    %s98 = sand.u32 %s96, 127
    %s99 = smul.addr %s95, 4
    %s100 = scalar_lea.vmem [#allocation2], %s99
    %s102 = scalar_lea.vmem %s100, %s97 [#allocation2]
    %v103 = vld [vmem:[%s102] ss:$0 sm:$0xff]
    %105 = vst [vmem:[#allocation5] sm:$0x1] %v103
    %s106 = sadd.s32 %s94, 128
    %s107 = sshrl.u32 %s106, 9
    %s108 = sand.u32 %s106, 511
    %s109 = sshrl.u32 %s108, 7
    %s110 = sand.u32 %s108, 127
    %s111 = smul.addr %s107, 4
    %s112 = scalar_lea.vmem [#allocation2], %s111
    %s114 = scalar_lea.vmem %s112, %s109 [#allocation2]
    %v115 = vld [vmem:[%s114] ss:$0 sm:$0xff]
    %s116 = scalar_lea.vmem [#allocation5], 1
    %118 = vst [vmem:[%s116] sm:$0x1] %v115
    %s119 = sadd.s32 %s94, 256
    %s120 = sshrl.u32 %s119, 9
    %s121 = sand.u32 %s119, 511
    %s122 = sshrl.u32 %s121, 7
    %s123 = sand.u32 %s121, 127
    %s124 = smul.addr %s120, 4
    %s125 = scalar_lea.vmem [#allocation2], %s124
    %s127 = scalar_lea.vmem %s125, %s122 [#allocation2]
    %v128 = vld [vmem:[%s127] ss:$0 sm:$0xff]
    %s129 = scalar_lea.vmem [#allocation5], 2
    %131 = vst [vmem:[%s129] sm:$0x1] %v128
    %p132 = scmp.eq.s32.totalorder 0, 0
    // Predicated region
    $region14: #{particle_type_loss_stats.2} parent=1 // pred_check
      %p133 = pneg %p132
    $region15: #{particle_type_loss_stats.2} parent=1 // pred_check_branch
      %135 = sbr.rel (%p133) target = $region17
    $region16: #{particle_type_loss_stats.2} parent=1 // pred_region
      %v136 = vlaneseq
      %vm137 = vcmp.ge.s32.totalorder %v136, 0
      %vm138 = vcmp.lt.s32.totalorder %v136, 384
      %vm139 = vmand %vm137, %vm138
      %140 = vst.msk [vmem:[%s2] sm:$0x7] %vm139, 0.0
      %141 = vst [vmem:[%s3] sm:$0x1f] 0
      %142 = vst [vmem:[%s3 + $0x8] sm:$0x1f] 0
      %143 = vst [vmem:[%s3 + $0x10] sm:$0x1f] 0
    $region17: #{particle_type_loss_stats.2} parent=1 // pred_fallthru
      _
    %v144 = vld [vmem:[#allocation4] sm:$0x1f]
    %v145 = vld [vmem:[#allocation4 + $0x8] sm:$0x1f]
    %v146 = vld [vmem:[#allocation4 + $0x10] sm:$0x1f]
    %v147 = vld [vmem:[#allocation5] sm:$0x7]
    %v148 = vlaneseq
    %v149 = vand.u32 %v148, 127
    %v150 = vadd.s32 %v149, 128
    %v151 = vadd.s32 %v149, 256
    %s152 = sadd.s32 0, 0
    %s153 = smul.u32 %s152, 384
    %v154 = vstv %s153
    %v155 = vadd.s32 %v154, %v149
    %v156 = vadd.s32 %v154, %v150
    %v157 = vadd.s32 %v154, %v151
    %vm158 = vcmp.lt.s32.totalorder %v155, 300
    %vm159 = vcmp.lt.s32.totalorder %v156, 300
    %vm160 = vcmp.lt.s32.totalorder %v157, 300
    %v161 = vlaneseq
    %v162 = vshrl.u32 %v161, 7
    %v163 = vsub.s32 0, %v162
    %v164 = vrot.slane %v147, %v163
    %v165 = vlaneseq
    %v166 = vshrl.u32 %v165, 7
    %v167 = vsub.s32 1, %v166
    %v168 = vrot.slane %v147, %v167
    %v169 = vlaneseq
    %v170 = vshrl.u32 %v169, 7
    %v171 = vsub.s32 2, %v170
    %v172 = vrot.slane %v147, %v171
    %v173 = vsel %vm158, %v164, 4294967295
    %v174 = vsel %vm159, %v168, 4294967295
    %v175 = vsel %vm160, %v172, 4294967295
    %v176 = vlaneseq
    %v177 = vshrl.u32 %v176, 7
    %v178 = vlaneseq
    %v179 = vshrl.u32 %v178, 7
    %v180 = vsub.s32 0, %v179
    %v181 = vrot.slane %v173, %v180
    %v182 = vlaneseq
    %v183 = vshrl.u32 %v182, 7
    %v184 = vsub.s32 0, %v183
    %v185 = vrot.slane %v174, %v184
    %v186 = vlaneseq
    %v187 = vshrl.u32 %v186, 7
    %v188 = vsub.s32 0, %v187
    %v189 = vrot.slane %v175, %v188
    %vm190 = vcmp.eq.s32.totalorder %v177, %v181
    %vm191 = vcmp.eq.s32.totalorder %v177, %v185
    %vm192 = vcmp.eq.s32.totalorder %v177, %v189
    %vm193 = vcmask 1044480
    %v194 = vsel %vm193, %v144, -inf
    %v195 = vrot.slane %v194, 4
    %v196 = vmax.f32 %v194, %v195
    %v197 = vrot.slane %v196, 2
    %v198 = vmax.f32 %v196, %v197
    %v199 = vrot.slane %v198, 1
    %v200 = vmax.f32 %v198, %v199
    %v201 = vsel %vm193, %v145, -inf
    %v202 = vrot.slane %v201, 4
    %v203 = vmax.f32 %v201, %v202
    %v204 = vrot.slane %v203, 2
    %v205 = vmax.f32 %v203, %v204
    %v206 = vrot.slane %v205, 1
    %v207 = vmax.f32 %v205, %v206
    %v208 = vsel %vm193, %v146, -inf
    %v209 = vrot.slane %v208, 4
    %v210 = vmax.f32 %v208, %v209
    %v211 = vrot.slane %v210, 2
    %v212 = vmax.f32 %v210, %v211
    %v213 = vrot.slane %v212, 1
    %v214 = vmax.f32 %v212, %v213
    %v215 = vsub.f32 %v144, %v200
    %v216 = vsub.f32 %v145, %v207
    %v217 = vsub.f32 %v146, %v214
    %v218 = vmul.f32 %v215, 1.442695
    %v219 = vpow.pop %v218
    %v220 = vmul.f32 %v216, 1.442695
    %v221 = vpow.pop %v220
    %v222 = vmul.f32 %v217, 1.442695
    %v223 = vpow.pop %v222
    %v224 = vsel %vm193, %v219, 0.0
    %v225 = vrot.slane %v224, 4
    %v226 = vadd.f32 %v224, %v225
    %v227 = vrot.slane %v226, 2
    %v228 = vadd.f32 %v226, %v227
    %v229 = vrot.slane %v228, 1
    %v230 = vadd.f32 %v228, %v229
    %v231 = vsel %vm193, %v221, 0.0
    %v232 = vrot.slane %v231, 4
    %v233 = vadd.f32 %v231, %v232
    %v234 = vrot.slane %v233, 2
    %v235 = vadd.f32 %v233, %v234
    %v236 = vrot.slane %v235, 1
    %v237 = vadd.f32 %v235, %v236
    %v238 = vsel %vm193, %v223, 0.0
    %v239 = vrot.slane %v238, 4
    %v240 = vadd.f32 %v238, %v239
    %v241 = vrot.slane %v240, 2
    %v242 = vadd.f32 %v240, %v241
    %v243 = vrot.slane %v242, 1
    %v244 = vadd.f32 %v242, %v243
    %v245 = vlog2.pop %v230
    %v246 = vmul.f32 %v245, 0.6931472
    %v247 = vlog2.pop %v237
    %v248 = vmul.f32 %v247, 0.6931472
    %v249 = vlog2.pop %v244
    %v250 = vmul.f32 %v249, 0.6931472
    %v251 = vadd.f32 %v200, %v246
    %v252 = vadd.f32 %v207, %v248
    %v253 = vadd.f32 %v214, %v250
    %v254 = vsel %vm190, 1, 0
    %v255 = vsel %vm191, 1, 0
    %v256 = vsel %vm192, 1, 0
    %v257 = vcvt.s32.f32 %v254
    %v258 = vcvt.s32.f32 %v255
    %v259 = vcvt.s32.f32 %v256
    %v260 = vmul.f32 %v144, %v257
    %v261 = vmul.f32 %v145, %v258
    %v262 = vmul.f32 %v146, %v259
    %v263 = vsel %vm193, %v260, 0.0
    %v264 = vrot.slane %v263, 4
    %v265 = vadd.f32 %v263, %v264
    %v266 = vrot.slane %v265, 2
    %v267 = vadd.f32 %v265, %v266
    %v268 = vrot.slane %v267, 1
    %v269 = vadd.f32 %v267, %v268
    %v270 = vsel %vm193, %v261, 0.0
    %v271 = vrot.slane %v270, 4
    %v272 = vadd.f32 %v270, %v271
    %v273 = vrot.slane %v272, 2
    %v274 = vadd.f32 %v272, %v273
    %v275 = vrot.slane %v274, 1
    %v276 = vadd.f32 %v274, %v275
    %v277 = vsel %vm193, %v262, 0.0
    %v278 = vrot.slane %v277, 4
    %v279 = vadd.f32 %v277, %v278
    %v280 = vrot.slane %v279, 2
    %v281 = vadd.f32 %v279, %v280
    %v282 = vrot.slane %v281, 1
    %v283 = vadd.f32 %v281, %v282
    %vm284 = vcmp.ne.s32.totalorder %v173, 4294967295
    %vm285 = vcmp.ne.s32.totalorder %v174, 4294967295
    %vm286 = vcmp.ne.s32.totalorder %v175, 4294967295
    %v287 = vsub.f32 %v251, %v269
    %v288 = vsub.f32 %v252, %v276
    %v289 = vsub.f32 %v253, %v283
    %v290 = vsel %vm284, %v287, 0.0
    %v291 = vsel %vm285, %v288, 0.0
    %v292 = vsel %vm286, %v289, 0.0
    %vm293 = vcmp.ge.f32.partialorder %v144, %v200
    %vm294 = vcmp.ge.f32.partialorder %v145, %v207
    %vm295 = vcmp.ge.f32.partialorder %v146, %v214
    %v296 = vsel %vm293, %v177, 5
    %v297 = vsel %vm294, %v177, 5
    %v298 = vsel %vm295, %v177, 5
    %v299 = vsel %vm193, %v296, 2147483647
    %v300 = vrot.slane %v299, 4
    %vm301 = vcmp.lt.s32.totalorder %v299, %v300
    %v302 = vsel %vm301, %v299, %v300
    %v303 = vrot.slane %v302, 2
    %vm304 = vcmp.lt.s32.totalorder %v302, %v303
    %v305 = vsel %vm304, %v302, %v303
    %v306 = vrot.slane %v305, 1
    %vm307 = vcmp.lt.s32.totalorder %v305, %v306
    %v308 = vsel %vm307, %v305, %v306
    %v309 = vsel %vm193, %v297, 2147483647
    %v310 = vrot.slane %v309, 4
    %vm311 = vcmp.lt.s32.totalorder %v309, %v310
    %v312 = vsel %vm311, %v309, %v310
    %v313 = vrot.slane %v312, 2
    %vm314 = vcmp.lt.s32.totalorder %v312, %v313
    %v315 = vsel %vm314, %v312, %v313
    %v316 = vrot.slane %v315, 1
    %vm317 = vcmp.lt.s32.totalorder %v315, %v316
    %v318 = vsel %vm317, %v315, %v316
    %v319 = vsel %vm193, %v298, 2147483647
    %v320 = vrot.slane %v319, 4
    %vm321 = vcmp.lt.s32.totalorder %v319, %v320
    %v322 = vsel %vm321, %v319, %v320
    %v323 = vrot.slane %v322, 2
    %vm324 = vcmp.lt.s32.totalorder %v322, %v323
    %v325 = vsel %vm324, %v322, %v323
    %v326 = vrot.slane %v325, 1
    %vm327 = vcmp.lt.s32.totalorder %v325, %v326
    %v328 = vsel %vm327, %v325, %v326
    %vm329 = vcmp.eq.s32.totalorder %v308, %v173
    %vm330 = vcmp.eq.s32.totalorder %v318, %v174
    %vm331 = vcmp.eq.s32.totalorder %v328, %v175
    %v332 = vld [vmem:[%s2] sm:$0x7]
    %v336 = vcombine.low %v290, %v291
    %v338 = vunpack.c.l.s4 1966171168
    %v339 = vunpack.c.0.s8 %v338
    %v340 = vlaneseq
    %v341 = vshrl.u32 %v340, 7
    %v342 = vsub.s32 %v339, %v341
    %v343 = vrot.slane %v336, %v342
    %v345 = vunpack.c.l.s4 1966171168
    %v346 = vunpack.c.0.s8 %v345
    %v347 = vlaneseq
    %v348 = vshrl.u32 %v347, 7
    %v349 = vsub.s32 %v346, %v348
    %v350 = vrot.slane %v292, %v349
    %v351 = vcombine.low %v343, %v350
    %v353 = vunpack.c.l.s4 1966171168
    %v354 = vunpack.c.0.s8 %v353
    %v355 = vlaneseq
    %v356 = vshrl.u32 %v355, 7
    %v357 = vsub.s32 %v354, %v356
    %v358 = vrot.slane %v351, %v357
    %v360 = vadd.f32 %v332, %v358
    %v361 = vlaneseq
    %vm362 = vcmp.ge.s32.totalorder %v361, 0
    %vm363 = vcmp.lt.s32.totalorder %v361, 384
    %vm364 = vmand %vm362, %vm363
    %365 = vst.msk [vmem:[%s2] sm:$0x7] %vm364, %v360
    %v366 = vsel %vm329, 1, 0
    %v367 = vsel %vm330, 1, 0
    %v368 = vsel %vm331, 1, 0
    %v369 = vlaneseq
    %v370 = vshrl.u32 %v369, 7
    %v371 = vsub.s32 0, %v370
    %v372 = vrot.slane %v366, %v371
    %v373 = vlaneseq
    %v374 = vshrl.u32 %v373, 7
    %v375 = vsub.s32 0, %v374
    %v376 = vrot.slane %v367, %v375
    %v377 = vlaneseq
    %v378 = vshrl.u32 %v377, 7
    %v379 = vsub.s32 0, %v378
    %v380 = vrot.slane %v368, %v379
    %vm381 = vcmp.eq.s32.totalorder %v372, 1
    %vm382 = vcmp.eq.s32.totalorder %v376, 1
    %vm383 = vcmp.eq.s32.totalorder %v380, 1
    %vm384 = vmand %vm190, %vm381
    %vm385 = vmand %vm191, %vm382
    %vm386 = vmand %vm192, %vm383
    %v387 = vsel %vm384, 1, 0
    %v388 = vsel %vm385, 1, 0
    %v389 = vsel %vm386, 1, 0
    %v390 = vshll.u32 %v387, 16
    %v391 = vshll.u32 %v388, 16
    %v392 = vshll.u32 %v389, 16
    %v393 = vor.u32 %v254, %v390
    %v394 = vor.u32 %v255, %v391
    %v395 = vor.u32 %v256, %v392
    %v396 = vld [vmem:[%s3] sm:$0x1f]
    %v397 = vld [vmem:[%s3 + $0x8] sm:$0x1f]
    %v398 = vld [vmem:[%s3 + $0x10] sm:$0x1f]
    %v399 = vadd.s32 %v396, %v393
    %v400 = vadd.s32 %v397, %v394
    %v401 = vadd.s32 %v398, %v395
    %402 = vst [vmem:[%s3] sm:$0x1f] %v399
    %403 = vst [vmem:[%s3 + $0x8] sm:$0x1f] %v400
    %404 = vst [vmem:[%s3 + $0x10] sm:$0x1f] %v401
    // Predicated region
    $region18: #{particle_type_loss_stats.2} parent=1 // pred_check
      _
    $region19: #{particle_type_loss_stats.2} parent=1 // pred_check_branch
      %406 = sbr.rel (0) target = $region21
    $region20: #{particle_type_loss_stats.2} parent=1 // pred_region
      _
    $region21: #{particle_type_loss_stats.2} parent=1 // pred_fallthru
      _
    // Predicated region
    $region22: #{particle_type_loss_stats.2} parent=1 // pred_check
      _
    $region23: #{particle_type_loss_stats.2} parent=1 // pred_check_branch
      %408 = sbr.rel (0) target = $region25
    $region24: #{particle_type_loss_stats.2} parent=1 // pred_region
      _
    $region25: #{particle_type_loss_stats.2} parent=1 // pred_fallthru
      _
    // Predicated region
    $region26: #{particle_type_loss_stats.2} parent=1 // pred_check
      _
    $region27: #{particle_type_loss_stats.2} parent=1 // pred_check_branch
      %410 = sbr.rel (0) target = $region29
    $region28: #{particle_type_loss_stats.2} parent=1 // pred_region
      _
    $region29: #{particle_type_loss_stats.2} parent=1 // pred_fallthru
      _
    // Predicated region
    $region30: #{particle_type_loss_stats.2} parent=1 // pred_check
      _
    $region31: #{particle_type_loss_stats.2} parent=1 // pred_check_branch
      %412 = sbr.rel (0) target = $region33
    $region32: #{particle_type_loss_stats.2} parent=1 // pred_region
      _
    $region33: #{particle_type_loss_stats.2} parent=1 // pred_fallthru
      _
    %413 = vsyncpa [#allocation3], 1

</llo_original>
